<compile_context>
chip_gen: v7x
topology: tpu7x:2x2x1
jax: 0.10.0
libtpu: 0.0.40
codegen_flags: <defaults>
</compile_context>

<pallas_src>
import jax
import jax.numpy as jnp
from jax.experimental import pallas as pl
from jax.experimental.pallas import tpu as pltpu


def positional_encoding_kernel(x_ref, w_ref, posb_ref, o_ref):
    # x_ref:    (1, tS, 1)  token scalars for this (batch, seq-tile)
    # w_ref:    (1, 1, D)   nn.Linear(1, D).weight, lane-major (resident)
    # posb_ref: (tS, D)     positional buffer + bias for this seq-tile
    # o_ref:    (1, tS, D)
    proj = x_ref[...] * w_ref[...]                                   # (1, tS, D)
    o_ref[...] = (proj + posb_ref[...][None, :, :]).astype(o_ref.dtype)


def make_positional_matrix(context_len, dims, dtype=jnp.float32):
    """Vectorized equivalent of the module's __init__ double loop.

    Matches PyTorch for odd `dims` too: only columns [0, 2*(dims//2)) are
    filled; a trailing odd column stays zero.
    """
    half = dims // 2
    pos = jnp.arange(context_len, dtype=jnp.float32)[:, None]        # (S, 1)
    i = jnp.arange(half, dtype=jnp.float32)[None, :]                 # (1, D/2)
    angle = pos / jnp.power(10000.0, 2.0 * i / float(dims))          # (S, D/2)
    pm = jnp.zeros((context_len, dims), dtype=dtype)
    pm = pm.at[:, 0:2 * half:2].set(jnp.sin(angle).astype(dtype))
    pm = pm.at[:, 1:2 * half:2].set(jnp.cos(angle).astype(dtype))
    return pm


def _choose_tile_s(S, D, itemsize, budget_bytes=1 << 20):
    """Largest multiple of 8 dividing S whose (tS, D) tile fits ~budget."""
    divisors = [t for t in range(8, S + 1, 8) if S % t == 0]
    if not divisors:
        return S                                  # tiny / odd S: one block
    fitting = [t for t in divisors if t * D * itemsize <= budget_bytes]
    return max(fitting) if fitting else min(divisors)


def positional_encoding_forward(x, w, b, pos, *, tile_s=None, out_dtype=None):
    """
    x:   (B, context_len)      scalar token values (projected 1 -> dims)
    w:   (dims, 1)             nn.Linear(1, dims).weight
    b:   (dims,)               nn.Linear(1, dims).bias
    pos: (context_len, dims)   sinusoidal positional buffer
    returns (B, context_len, dims)
    """
    B, S = x.shape
    D = w.shape[0]
    assert pos.shape == (S, D), "sequence length must match the positional buffer"
    out_dtype = out_dtype or x.dtype

    # Fold the bias into the (init-time constant) positional table.
    posb = (pos.astype(jnp.float32) + b.astype(jnp.float32)[None, :]).astype(pos.dtype)

    if tile_s is None:
        tile_s = _choose_tile_s(S, D, jnp.dtype(out_dtype).itemsize)
    assert S % tile_s == 0, "tile_s must divide the sequence length"

    x3 = x.reshape(B, S, 1)        # token scalars as a sublane column
    w_row = w.reshape(1, 1, D)     # (D, 1) -> (1, 1, D): lane-major weight row

    # Sequence tiles outer (slow), batch inner (fast): posb's block index only
    # changes with the slow axis, so its DMA is skipped across the batch loop.
    grid = (S // tile_s, B)

    return pl.pallas_call(
        positional_encoding_kernel,
        out_shape=jax.ShapeDtypeStruct((B, S, D), out_dtype),
        grid=grid,
        in_specs=[
            pl.BlockSpec((1, tile_s, 1), lambda si, bi: (bi, si, 0)),   # x
            pl.BlockSpec((1, 1, D), lambda si, bi: (0, 0, 0)),          # weight (resident)
            pl.BlockSpec((tile_s, D), lambda si, bi: (si, 0)),          # pos + bias (reused over batch)
        ],
        out_specs=pl.BlockSpec((1, tile_s, D), lambda si, bi: (bi, si, 0)),
        compiler_params=pltpu.CompilerParams(
            dimension_semantics=("parallel", "parallel"),
        ),
    )(x3, w_row, posb)


def reference_forward(x, w, b, pos):
    """Pure-JAX mirror of the PyTorch forward."""
    return (x[:, :, None] * w[:, 0][None, None, :]
            + b[None, None, :]
            + pos[None, :, :])


if __name__ == "__main__":
    B, CONTEXT_LEN, DIMS = 2, 64, 128   # DIMS multiple of 128 -> lane-dense stores

    key = jax.random.PRNGKey(0)
    kx, kw, kb = jax.random.split(key, 3)

    # One scalar token value per position (the module projects 1 -> dims).
    x = jax.random.normal(kx, (B, CONTEXT_LEN), dtype=jnp.float32)

    # nn.Linear(1, dims) default init: uniform(-1/sqrt(1), +1/sqrt(1)).
    w = jax.random.uniform(kw, (DIMS, 1), jnp.float32, -1.0, 1.0)
    b = jax.random.uniform(kb, (DIMS,), jnp.float32, -1.0, 1.0)

    pos = make_positional_matrix(CONTEXT_LEN, DIMS)
    ref = reference_forward(x, w, b, pos)

    # Multi-step pipelined grid: 8 sequence tiles x 2 batches.
    out = jax.block_until_ready(positional_encoding_forward(x, w, b, pos, tile_s=8))
    assert out.shape == (B, CONTEXT_LEN, DIMS)
    assert jnp.allclose(out, ref, atol=1e-5, rtol=1e-5), "mismatch vs reference (tile_s=8)"

    # Auto-tiled path (picks the largest tile that fits the VMEM budget).
    out2 = jax.block_until_ready(positional_encoding_forward(x, w, b, pos))
    assert jnp.allclose(out2, ref, atol=1e-5, rtol=1e-5), "mismatch vs reference (auto tile)"

    print("KERNEL_OK")
</pallas_src>

<mosaic_0001>
module attributes {stable_mosaic.version = 11 : i64} {
  func.func @positional_encoding_kernel(%arg0: i32, %arg1: i32, %arg2: memref<1x8x1xf32, #tpu.memory_space<vmem>>, %arg3: memref<1x1x128xf32, #tpu.memory_space<vmem>>, %arg4: memref<8x128xf32, #tpu.memory_space<vmem>>, %arg5: memref<1x8x128xf32, #tpu.memory_space<vmem>>) attributes {dimension_semantics = [#tpu.dimension_semantics<parallel>, #tpu.dimension_semantics<parallel>], iteration_bounds = array<i64: 8, 2>, scalar_prefetch = 0 : i64, scratch_operands = 0 : i64, tpu.core_type = #tpu.core_type<tc>, window_params = [{transform_indices = @transform_0, window_bounds = array<i64: 1, 8, 1>}, {pipeline_mode = #tpu.pipeline_mode<synchronous>, transform_indices = @transform_1, window_bounds = array<i64: 1, 1, 128>}, {transform_indices = @transform_2, window_bounds = array<i64: 8, 128>}, {transform_indices = @transform_3, window_bounds = array<i64: 1, 8, 128>}]} {
    %c0 = arith.constant 0 : index
    %c0_0 = arith.constant 0 : index
    %c0_1 = arith.constant 0 : index
    %0 = vector.load %arg2[%c0, %c0_0, %c0_1] : memref<1x8x1xf32, #tpu.memory_space<vmem>>, vector<1x8x1xf32>
    %c0_2 = arith.constant 0 : index
    %c0_3 = arith.constant 0 : index
    %c0_4 = arith.constant 0 : index
    %1 = vector.load %arg3[%c0_2, %c0_3, %c0_4] : memref<1x1x128xf32, #tpu.memory_space<vmem>>, vector<1x1x128xf32>
    %2 = vector.broadcast %0 : vector<1x8x1xf32> to vector<1x8x128xf32>
    %3 = vector.broadcast %1 : vector<1x1x128xf32> to vector<1x8x128xf32>
    %4 = arith.mulf %2, %3 : vector<1x8x128xf32>
    %c0_5 = arith.constant 0 : index
    %c0_6 = arith.constant 0 : index
    %5 = vector.load %arg4[%c0_5, %c0_6] : memref<8x128xf32, #tpu.memory_space<vmem>>, vector<8x128xf32>
    %6 = vector.shape_cast %5 : vector<8x128xf32> to vector<1x8x128xf32>
    %7 = arith.addf %4, %6 : vector<1x8x128xf32>
    %c0_7 = arith.constant 0 : index
    %c0_8 = arith.constant 0 : index
    %c0_9 = arith.constant 0 : index
    %8 = vector.load %arg5[%c0_7, %c0_8, %c0_9] : memref<1x8x128xf32, #tpu.memory_space<vmem>>, vector<1x8x128xf32>
    tpu.vector_store %arg5[%c0_7, %c0_8, %c0_9], %7 {strides = array<i32>} : memref<1x8x128xf32, #tpu.memory_space<vmem>>, vector<1x8x128xf32>,
    return
  }
  func.func @transform_0(%arg0: i32, %arg1: i32) -> (i32, i32, i32) {
    %c0_i32 = arith.constant 0 : i32
    %c0_i32_0 = arith.constant 0 : i32
    return %arg1, %arg0, %c0_i32 : i32, i32, i32
  }
  func.func @transform_1(%arg0: i32, %arg1: i32) -> (i32, i32, i32) {
    %c0_i32 = arith.constant 0 : i32
    %c0_i32_0 = arith.constant 0 : i32
    %c0_i32_1 = arith.constant 0 : i32
    %c0_i32_2 = arith.constant 0 : i32
    return %c0_i32, %c0_i32_0, %c0_i32_1 : i32, i32, i32
  }
  func.func @transform_2(%arg0: i32, %arg1: i32) -> (i32, i32) {
    %c0_i32 = arith.constant 0 : i32
    %c0_i32_0 = arith.constant 0 : i32
    return %arg0, %c0_i32 : i32, i32
  }
  func.func @transform_3(%arg0: i32, %arg1: i32) -> (i32, i32, i32) {
    %c0_i32 = arith.constant 0 : i32
    %c0_i32_0 = arith.constant 0 : i32
    return %arg1, %arg0, %c0_i32 : i32, i32, i32
  }
}

</mosaic_0001>

<llo_original>
// kernel: tpu_custom_call.1
$region0: #{tpu_custom_call.1}
  #allocation0 [shape = 'u32[]', space=smem, size = 0x4, offset = 0x4, fixed_abs, tag = 'smem constant byte address 0x4 - core index']
  #allocation1 [shape = 'u32[144,128]{1,0:T(1,128)}', space=vmem, size = 0x12000, scoped, tag = 'internal scratch']
  %s0 = inlined_call_operand.vmem [shape: f32[2,64,1], index: 0, kind: input, shape index: {}]
  %s1 = inlined_call_operand.vmem [shape: f32[1,1,128], index: 1, kind: input, shape index: {}]
  %s2 = inlined_call_operand.vmem [shape: f32[64,128], index: 2, kind: input, shape index: {}]
  %s3 = inlined_call_operand.hbm [shape: f32[2,64,128], index: 3, kind: output, shape index: {}]
  %s4 = sld [smem:[#allocation0]]
  $region45: #{tpu_custom_call.1} parent=0
    _
  %s6 = ssub.s32 1, %s4
  %s7 = scalar_select 0, %s6, %s4
  $region1: #{tpu_custom_call.1} parent=0
    #allocation2 [shape = 'u8[8192]{0}', space=vmem, size = 0x2000, scoped, tag = 'output window, operand 0']
    #allocation3 [shape = 's32[2]{0}', space=sflag, size = 0x8, scoped, tag = 'scoped memory for tpu_custom_call.1']
    %8 = vsyncpa [#allocation3], 0
    %s9 = scalar_lea.sflag [#allocation3], 1
    %10 = vsyncpa %s9, 0
    loop: start=0, step=1, limit=18
    $region2: #{tpu_custom_call.1} parent=1 // loop_pre_header
      _
    $region3: #{tpu_custom_call.1} parent=1 // loop_header
      %s12 = sphi 0, %s16
      %p13 = scmp.ge.s32.totalorder %s12, 18
      %s19 = sphi 0, %s31
      %s20 = sphi 0, %s27
      %s21 = sphi 0, %s19
      %s22 = sphi 0, %s20
      %s23 = sphi 0, %s21
      %s24 = sphi 0, %s22
      %s36 = sphi 0, %s38
      %s39 = sphi 0, %s36
      %s40 = sphi 0, %s39
      %s56 = sphi 0, %s40
      %s60 = sphi 0, %s60
      %s62 = sphi 0, %s60
      %s63 = sphi 0, %s62
      %s77 = sphi 0, %s63
      %s83 = sphi 0, %s85
      %s86 = sphi 0, %s83
      %s87 = sphi 0, %s86
      %s103 = sphi 0, %s87
      %s111 = sphi 0, %s113
      %s114 = sphi 0, %s111
      %s115 = sphi 0, %s114
      %s131 = sphi 0, %s115
    $region4: #{tpu_custom_call.1} parent=1 // loop_header_branch
      %15 = sbr.rel (%p13) target = $region8
    $region5: #{tpu_custom_call.1} parent=1 // loop_body
      %s17 = ssub.s32 %s12, 1
      %s18 = ssub.s32 %s12, 2
      %s25 = sadd.s32 1, %s20
      %p26 = scmp.ge.s32.totalorder %s25, 2
      %s27 = scalar_select %p26, 0, %s25
      %s28 = sadd.s32 1, %s19
      %s29 = scalar_select %p26, %s28, %s19
      %p30 = scmp.ge.s32.totalorder %s29, 8
      %s31 = scalar_select %p30, 0, %s29
      %s32 = ssub.s32 %s20, %s27
      %s33 = ssub.s32 %s19, %s31
      %s34 = sor.u32 %s32, %s33
      %p35 = scmp.eq.s32.totalorder %s34, 0
      %s37 = sadd.s32 %s36, 1
      %s38 = scalar_select %p35, %s36, %s37
      %p41 = pneg %p35
      %p42 = scmp.eq.s32.totalorder %s12, 15
      %p43 = por %p41, %p42
      %p44 = scmp.ne.s32.totalorder %s36, %s39
      %p45 = scmp.eq.s32.totalorder %s12, 0
      %p46 = por %p44, %p45
      %p47 = scmp.ne.s32.totalorder %s36, %s39
      %p48 = scmp.eq.s32.totalorder %s17, 15
      %p49 = por %p47, %p48
      %p50 = scmp.ne.s32.totalorder %s39, %s40
      %p51 = scmp.eq.s32.totalorder %s17, 0
      %p52 = por %p50, %p51
      %p53 = scmp.ne.s32.totalorder %s39, %s40
      %p54 = scmp.eq.s32.totalorder %s18, 15
      %p55 = por %p53, %p54
      %p57 = scmp.ne.s32.totalorder %s40, %s56
      %p58 = scmp.eq.s32.totalorder %s18, 0
      %p59 = por %p57, %p58
      %s61 = sadd.s32 %s60, 1
      %p64 = scmp.eq.s32.totalorder %s12, 15
      %p65 = scmp.ne.s32.totalorder %s60, %s62
      %p66 = scmp.eq.s32.totalorder %s12, 0
      %p67 = por %p65, %p66
      %p68 = scmp.ne.s32.totalorder %s60, %s62
      %p69 = scmp.eq.s32.totalorder %s17, 15
      %p70 = por %p68, %p69
      %p71 = scmp.ne.s32.totalorder %s62, %s63
      %p72 = scmp.eq.s32.totalorder %s17, 0
      %p73 = por %p71, %p72
      %p74 = scmp.ne.s32.totalorder %s62, %s63
      %p75 = scmp.eq.s32.totalorder %s18, 15
      %p76 = por %p74, %p75
      %p78 = scmp.ne.s32.totalorder %s63, %s77
      %p79 = scmp.eq.s32.totalorder %s18, 0
      %p80 = por %p78, %p79
      %s81 = ssub.s32 %s19, %s31
      %p82 = scmp.eq.s32.totalorder %s81, 0
      %s84 = sadd.s32 %s83, 1
      %s85 = scalar_select %p82, %s83, %s84
      %p88 = pneg %p82
      %p89 = scmp.eq.s32.totalorder %s12, 15
      %p90 = por %p88, %p89
      %p91 = scmp.ne.s32.totalorder %s83, %s86
      %p92 = scmp.eq.s32.totalorder %s12, 0
      %p93 = por %p91, %p92
      %p94 = scmp.ne.s32.totalorder %s83, %s86
      %p95 = scmp.eq.s32.totalorder %s17, 15
      %p96 = por %p94, %p95
      %p97 = scmp.ne.s32.totalorder %s86, %s87
      %p98 = scmp.eq.s32.totalorder %s17, 0
      %p99 = por %p97, %p98
      %p100 = scmp.ne.s32.totalorder %s86, %s87
      %p101 = scmp.eq.s32.totalorder %s18, 15
      %p102 = por %p100, %p101
      %p104 = scmp.ne.s32.totalorder %s87, %s103
      %p105 = scmp.eq.s32.totalorder %s18, 0
      %p106 = por %p104, %p105
      %s107 = ssub.s32 %s20, %s27
      %s108 = ssub.s32 %s19, %s31
      %s109 = sor.u32 %s107, %s108
      %p110 = scmp.eq.s32.totalorder %s109, 0
      %s112 = sadd.s32 %s111, 1
      %s113 = scalar_select %p110, %s111, %s112
      %p116 = pneg %p110
      %p117 = scmp.eq.s32.totalorder %s12, 15
      %p118 = por %p116, %p117
      %p119 = scmp.ne.s32.totalorder %s111, %s114
      %p120 = scmp.eq.s32.totalorder %s12, 0
      %p121 = por %p119, %p120
      %p122 = scmp.ne.s32.totalorder %s111, %s114
      %p123 = scmp.eq.s32.totalorder %s17, 15
      %p124 = por %p122, %p123
      %p125 = scmp.ne.s32.totalorder %s114, %s115
      %p126 = scmp.eq.s32.totalorder %s17, 0
      %p127 = por %p125, %p126
      %p128 = scmp.ne.s32.totalorder %s114, %s115
      %p129 = scmp.eq.s32.totalorder %s18, 15
      %p130 = por %p128, %p129
      %p132 = scmp.ne.s32.totalorder %s115, %s131
      %p133 = scmp.eq.s32.totalorder %s18, 0
      %p134 = por %p132, %p133
      %p135 = scmp.le.s32.totalorder 1, %s12
      %p136 = scmp.lt.s32.totalorder %s12, 17
      %p137 = pnand %p135, %p136
      %p138 = pneg %p137
      // Predicated region
      $region9: #{tpu_custom_call.1} parent=5 // pred_check
        _
      $region10: #{tpu_custom_call.1} parent=5 // pred_check_branch
        %140 = sbr.rel (%p137) target = $region12
      $region11: #{tpu_custom_call.1} parent=5 // pred_region
        %s141 = ssub.s32 %s12, 1
        // Predicated region
        $region13: #{tpu_custom_call.1} parent=11 // pred_check
          %p142 = pneg %p73
        $region14: #{tpu_custom_call.1} parent=11 // pred_check_branch
          %144 = sbr.rel (%p142) target = $region16
        $region15: #{tpu_custom_call.1} parent=11 // pred_region
          _
        $region16: #{tpu_custom_call.1} parent=11 // pred_fallthru
          _
      $region12: #{tpu_custom_call.1} parent=5 // pred_fallthru
        _
      %p145 = scmp.lt.s32.totalorder %s12, 16
      // Predicated region
      $region17: #{tpu_custom_call.1} parent=5 // pred_check
        %p146 = pneg %p145
      $region18: #{tpu_custom_call.1} parent=5 // pred_check_branch
        %148 = sbr.rel (%p146) target = $region20
      $region19: #{tpu_custom_call.1} parent=5 // pred_region
        // Predicated region
        $region21: #{tpu_custom_call.1} parent=19 // pred_check
          %p149 = pneg %p46
        $region22: #{tpu_custom_call.1} parent=19 // pred_check_branch
          %151 = sbr.rel (%p149) target = $region24
        $region23: #{tpu_custom_call.1} parent=19 // pred_region
          %p152 = scmp.lt.s32.totalorder %s20, 1
          %s153 = scalar_select %p152, %s20, 1
          %p154 = scmp.lt.s32.totalorder %s19, 7
          %s155 = scalar_select %p154, %s19, 7
          %s156 = smul.addr %s153, 8
          %s157 = sadd.s32 %s155, %s156
          %s158 = smul.addr %s157, 8
          %s159 = scalar_lea.vmem %s0, %s158
        $region24: #{tpu_custom_call.1} parent=19 // pred_fallthru
          _
        // Predicated region
        $region25: #{tpu_custom_call.1} parent=19 // pred_check
          %p160 = pneg %p93
        $region26: #{tpu_custom_call.1} parent=19 // pred_check_branch
          %162 = sbr.rel (%p160) target = $region28
        $region27: #{tpu_custom_call.1} parent=19 // pred_region
          %p163 = scmp.lt.s32.totalorder %s19, 7
          %s164 = scalar_select %p163, %s19, 7
          %s165 = smul.addr %s164, 8
          %s166 = scalar_lea.vmem %s2, %s165
        $region28: #{tpu_custom_call.1} parent=19 // pred_fallthru
          _
      $region20: #{tpu_custom_call.1} parent=5 // pred_fallthru
        _
      %p167 = scmp.le.s32.totalorder 1, %s12
      %p168 = scmp.lt.s32.totalorder %s12, 17
      %p169 = pnand %p167, %p168
      %p170 = pneg %p169
      // Predicated region
      $region29: #{tpu_custom_call.1} parent=5 // pred_check
        _
      $region30: #{tpu_custom_call.1} parent=5 // pred_check_branch
        %172 = sbr.rel (%p169) target = $region32
      $region31: #{tpu_custom_call.1} parent=5 // pred_region
        %s173 = ssub.s32 %s12, 1
        %p174 = scmp.lt.s32.totalorder %s22, 1
        %s175 = scalar_select %p174, %s22, 1
        %p176 = scmp.lt.s32.totalorder %s21, 7
        %s177 = scalar_select %p176, %s21, 7
        %s178 = smul.addr %s175, 8
        %s179 = sadd.s32 %s177, %s178
        %s180 = smul.addr %s179, 8
        %s181 = scalar_lea.vmem %s0, %s180
        %p182 = pneg %p52
        %p183 = pneg %p49
        %p184 = pneg %p73
        %p185 = pneg %p70
        %p186 = scmp.lt.s32.totalorder %s21, 7
        %s187 = scalar_select %p186, %s21, 7
        %s188 = smul.addr %s187, 8
        %s189 = scalar_lea.vmem %s2, %s188
        %p190 = pneg %p99
        %p191 = pneg %p96
        %p192 = pneg %p127
        %p193 = pneg %p124
        %s194 = sand.u32 %s114, 1
        %s195 = scalar_lea.sflag [#allocation3], %s194
        %s196 = sand.u32 %s114, 1
        %s197 = smul.addr %s196, 8
        %s198 = scalar_lea.vmem [#allocation2], %s197
        %p199 = scmp.lt.s32.totalorder %s22, 1
        %s200 = scalar_select %p199, %s22, 1
        %p201 = scmp.lt.s32.totalorder %s21, 7
        %s202 = scalar_select %p201, %s21, 7
        %s203 = smul.addr %s200, 8
        %s204 = sadd.s32 %s202, %s203
        %s205 = smul.addr %s204, 8
        %s206 = scalar_lea.vmem %s0, %s205
        %p207 = scmp.lt.s32.totalorder %s21, 7
        %s208 = scalar_select %p207, %s21, 7
        %s209 = smul.addr %s208, 8
        %s210 = scalar_lea.vmem %s2, %s209
        %v211 = vld [vmem:[%s206] sm:$0xff]
        %v212 = vld [vmem:[%s1] sm:$0x1]
        %214 = vset.pattern.permute.xlu0 0
        %215 = vperm.xlu0 %214, %v211
        %v216 = vpop.permute.xlu0 %215
        %v219 = vlaneseq
        %v220 = vshrl.u32 %v219, 7
        %v221 = vsub.s32 0, %v220
        %v222 = vrot.slane %v212, %v221
        %v224 = vmul.f32 %v216, %v222
        %v225 = vld [vmem:[%s210] sm:$0xff]
        %v226 = vadd.f32 %v224, %v225
        %227 = vst [vmem:[%s198] sm:$0xff] %v226
        %s228 = sand.u32 %s114, 1
        %s229 = scalar_lea.sflag [#allocation3], %s228
        %s230 = sand.u32 %s114, 1
        %s231 = smul.addr %s230, 8
        %s232 = scalar_lea.vmem [#allocation2], %s231
        // Predicated region
        $region33: #{tpu_custom_call.1} parent=31 // pred_check
          %p233 = pneg %p124
        $region34: #{tpu_custom_call.1} parent=31 // pred_check_branch
          %235 = sbr.rel (%p233) target = $region36
        $region35: #{tpu_custom_call.1} parent=31 // pred_region
          %s237 = ssub.s32 128, 128
          %238 = vsyncadd %s229, %s237
          %s239 = smul.addr %s22, 8
          %s240 = sadd.s32 %s21, %s239
          %s241 = smul.addr %s240, 128
          %s242 = scalar_lea.hbm %s3, %s241
          %s244 = sshll.u32 %s232, 4
          %s245 = int_to_ptr.vmem [resolvable:$true] %s244
          %247 = dma.vmem_to_hbm [thread:$0]  %s245, 128, %s242, %s229
        $region36: #{tpu_custom_call.1} parent=31 // pred_fallthru
          _
      $region32: #{tpu_custom_call.1} parent=5 // pred_fallthru
        _
      %p248 = scmp.le.s32.totalorder 2, %s12
      // Predicated region
      $region37: #{tpu_custom_call.1} parent=5 // pred_check
        %p249 = pneg %p248
      $region38: #{tpu_custom_call.1} parent=5 // pred_check_branch
        %251 = sbr.rel (%p249) target = $region40
      $region39: #{tpu_custom_call.1} parent=5 // pred_region
        %s252 = ssub.s32 %s12, 2
        // Predicated region
        $region41: #{tpu_custom_call.1} parent=39 // pred_check
          %p253 = pneg %p130
        $region42: #{tpu_custom_call.1} parent=39 // pred_check_branch
          %255 = sbr.rel (%p253) target = $region44
        $region43: #{tpu_custom_call.1} parent=39 // pred_region
          %s256 = sand.u32 %s115, 1
          %s257 = scalar_lea.sflag [#allocation3], %s256
          %s258 = sand.u32 %s115, 1
          %s259 = smul.addr %s258, 8
          %s260 = scalar_lea.vmem [#allocation2], %s259
          %261 = dma.done %s257, 128
        $region44: #{tpu_custom_call.1} parent=39 // pred_fallthru
          _
      $region40: #{tpu_custom_call.1} parent=5 // pred_fallthru
        _
    $region6: #{tpu_custom_call.1} parent=1 // loop_footer
      %s16 = sadd.s32 1, %s12
    $region7: #{tpu_custom_call.1} parent=1 // loop_footer_branch
      %11 = sbr.rel target = $region3
    $region8: #{tpu_custom_call.1} parent=1 // loop_exit
      _
    %262 = vsyncpa [#allocation3], 1
    %s263 = scalar_lea.sflag [#allocation3], 1
    %264 = vsyncpa %s263, 1

</llo_original>
